<compile_context>
chip_gen: v7x
topology: tpu7x:2x2x1
jax: 0.10.0
libtpu: 0.0.40
codegen_flags: <defaults>
</compile_context>

<pallas_src>
import functools

import jax
import jax.numpy as jnp
from jax.experimental import pallas as pl
from jax.experimental.pallas import tpu as pltpu

LANES = 128


def _round_up(n, m):
    return pl.cdiv(n, m) * m


def _pad_to(arr, shape, fill=0.0):
    pads = [(0, t - s) for s, t in zip(arr.shape, shape)]
    if all(p == (0, 0) for p in pads):
        return arr
    return jnp.pad(arr, pads, constant_values=fill)


def predictor_kernel(x_ref, w1_ref, b1_ref, w2_ref, b2_ref, w3_ref, b3_ref, out_ref):
    out_dim = out_ref.shape[-1]

    # bf16 MXU operands throughout, f32 accumulation (preferred_element_type).
    x = x_ref[...].astype(jnp.bfloat16)

    # Encoder hidden layer: Linear + ReLU (dropout inactive in eval)
    h = jnp.dot(x, w1_ref[...], preferred_element_type=jnp.float32) + b1_ref[...]
    h = jnp.maximum(h, 0.0)

    # Encoder output layer: Linear, representations_nonlin == 'none'
    rep = jnp.dot(h.astype(jnp.bfloat16), w2_ref[...],
                  preferred_element_type=jnp.float32) + b2_ref[...]

    # Predictor.forward: clamp(-1, 1) because representations_nonlin == 'none'
    # (padded rep columns are exactly 0 -> clamp keeps them 0)
    rep = jnp.clip(rep, -1.0, 1.0)

    # Predictor head: Linear + softmax. Padded logit columns carry bias = -1e30 (f32),
    # so exp() underflows to 0 and they do not perturb the softmax.
    logits = jnp.dot(rep.astype(jnp.bfloat16), w3_ref[...],
                     preferred_element_type=jnp.float32) + b3_ref[...]
    m = jnp.max(logits, axis=-1, keepdims=True)
    e = jnp.exp(logits - m)
    probs = e / jnp.sum(e, axis=-1, keepdims=True)   # exact: rows sum to 1

    # Store only the valid out_dim columns; padded columns never touch HBM.
    out_ref[...] = probs[:, :out_dim].astype(out_ref.dtype)


@functools.partial(jax.jit, static_argnames=("tb",))
def predictor_forward(x, params, *, tb=4096):
    """x: [B, input_dim] f32; params: (w1,b1,w2,b2,w3,b3) with w stored [in, out]."""
    w1, b1, w2, b2, w3, b3 = params
    B, in_dim = x.shape
    hid, rep_dim, out_dim = w1.shape[1], w2.shape[1], w3.shape[1]

    # ---- lane-pad the tiny feature dims to full 128-lane vregs (one-time, KB-scale)
    hid_p = int(_round_up(hid, LANES))
    rep_p = int(_round_up(rep_dim, LANES))
    logit_p = int(_round_up(out_dim, LANES))

    # Weights as bf16 MXU operands; biases stay f32.
    w1p = _pad_to(w1, (in_dim, hid_p)).astype(jnp.bfloat16)
    b1p = _pad_to(b1, (1, hid_p))
    w2p = _pad_to(w2, (hid_p, rep_p)).astype(jnp.bfloat16)
    b2p = _pad_to(b2, (1, rep_p))
    w3p = _pad_to(w3, (rep_p, logit_p)).astype(jnp.bfloat16)
    if logit_p > out_dim:
        # padded logit columns must be driven to -inf-ish so softmax ignores them
        b3p = jnp.concatenate(
            [b3, jnp.full((1, logit_p - out_dim), -1e30, b3.dtype)], axis=1)
    else:
        b3p = b3

    # ---- batch tiling: pad B only to a multiple of 8, then derive the tile size from
    # the tile count so per-call padding is at most ~8 rows per tile (not tb-1).
    B8 = int(_round_up(B, 8))
    tb_req = int(max(8, min(tb, B8)))
    n_tiles = int(pl.cdiv(B8, tb_req))
    if B8 >= 16:
        n_tiles = max(n_tiles, 2)          # v7x: >=2 tiles so "parallel" uses both TCs
    tb_eff = int(_round_up(pl.cdiv(B8, n_tiles), 8))
    B_pad = n_tiles * tb_eff
    xp = _pad_to(x, (B_pad, in_dim))       # no-op when B already == B_pad

    const2 = lambda i: (0, 0)  # weights: constant block index -> DMA'd once, stay resident

    out = pl.pallas_call(
        predictor_kernel,
        out_shape=jax.ShapeDtypeStruct((B_pad, out_dim), jnp.float32),
        grid=(n_tiles,),
        in_specs=[
            pl.BlockSpec((tb_eff, in_dim), lambda i: (i, 0)),  # x tile (last dim == full dim)
            pl.BlockSpec((in_dim, hid_p), const2),             # W1 (bf16)
            pl.BlockSpec((1, hid_p), const2),                  # b1 (f32)
            pl.BlockSpec((hid_p, rep_p), const2),              # W2 (bf16)
            pl.BlockSpec((1, rep_p), const2),                  # b2 (f32)
            pl.BlockSpec((rep_p, logit_p), const2),            # W3 (bf16)
            pl.BlockSpec((1, logit_p), const2),                # b3 (f32, padded with -1e30)
        ],
        # Narrow output: only the out_dim valid probability columns go to HBM.
        out_specs=pl.BlockSpec((tb_eff, out_dim), lambda i: (i, 0)),
        compiler_params=pltpu.CompilerParams(
            dimension_semantics=("parallel",),        # shards batch tiles across TCs (v7x)
            vmem_limit_bytes=48 * 1024 * 1024,        # within v7x 64 MiB/TC; ample on v5e/v6e
        ),
    )(xp, w1p, b1p, w2p, b2p, w3p, b3p)

    # strip the (tiny) batch padding; columns are already exactly out_dim wide
    return out if B_pad == B else out[:B]


def reference_forward(x, params):
    w1, b1, w2, b2, w3, b3 = params
    h = jnp.maximum(x @ w1 + b1, 0.0)
    rep = jnp.clip(h @ w2 + b2, -1.0, 1.0)
    logits = rep @ w3 + b3
    return jax.nn.softmax(logits, axis=-1)


def init_params(key, input_dim, hidden_dim, rep_dim, output_dim):
    ks = jax.random.split(key, 6)

    # Deterministic synthetic init (uniform, fan-in scaled, like torch Linear default)
    def lin(kw, kb, fan_in, fan_out):
        bound = 1.0 / jnp.sqrt(float(fan_in))
        w = jax.random.uniform(kw, (fan_in, fan_out), jnp.float32, -bound, bound)
        b = jax.random.uniform(kb, (1, fan_out), jnp.float32, -bound, bound)
        return w, b

    w1, b1 = lin(ks[0], ks[1], input_dim, hidden_dim)
    w2, b2 = lin(ks[2], ks[3], hidden_dim, rep_dim)
    w3, b3 = lin(ks[4], ks[5], rep_dim, output_dim)
    return (w1, b1, w2, b2, w3, b3)


if __name__ == "__main__":
    # Shapes consistent with the module:
    #   input_dim=8, predictor_config['hidden_layers']=[32, 16],
    #   output_dim=4, task='classification', representations_nonlin='none'
    # TODO(synk): training loop (_train/validate, CrossEntropyLoss, Adam) is host-side
    # orchestration and is not part of the forward-pass kernel.
    B, input_dim, hidden_dim, rep_dim, output_dim = 8, 8, 32, 16, 4

    key = jax.random.PRNGKey(0)
    kx, kp, kx2 = jax.random.split(key, 3)
    params = init_params(kp, input_dim, hidden_dim, rep_dim, output_dim)

    # tolerance accounts for bf16 MXU operands (f32 accumulation); f32 reference
    TOL = 3e-2

    # small batch (single grid step)
    x = jax.random.normal(kx, (B, input_dim), jnp.float32)
    out = jax.block_until_ready(predictor_forward(x, params))
    ref = reference_forward(x, params)
    assert out.shape == (B, output_dim)
    assert jnp.allclose(out, ref, atol=TOL, rtol=0.0), "mismatch vs JAX reference (small B)"
    assert jnp.allclose(jnp.sum(out, axis=-1), 1.0, atol=1e-5), "softmax rows not normalized"

    # larger, tile-unaligned batch to exercise the batch grid + padding path
    B2 = 300
    x2 = jax.random.normal(kx2, (B2, input_dim), jnp.float32)
    out2 = jax.block_until_ready(predictor_forward(x2, params, tb=128))
    ref2 = reference_forward(x2, params)
    assert out2.shape == (B2, output_dim)
    assert jnp.allclose(out2, ref2, atol=TOL, rtol=0.0), "mismatch vs JAX reference (gridded B)"

    # large-batch path with the default (big) tile, >=2 tiles for v7x megacore
    B3 = 4100
    x3 = jax.random.normal(kx2, (B3, input_dim), jnp.float32)
    out3 = jax.block_until_ready(predictor_forward(x3, params))
    ref3 = reference_forward(x3, params)
    assert out3.shape == (B3, output_dim)
    assert jnp.allclose(out3, ref3, atol=TOL, rtol=0.0), "mismatch vs JAX reference (large B)"

    print("KERNEL_OK")
</pallas_src>

<mosaic_0001>
module attributes {stable_mosaic.version = 11 : i64} {
  func.func @predictor_kernel(%arg0: i32, %arg1: memref<8x8xf32, #tpu.memory_space<vmem>>, %arg2: memref<8x128xbf16, #tpu.memory_space<vmem>>, %arg3: memref<1x128xf32, #tpu.memory_space<vmem>>, %arg4: memref<128x128xbf16, #tpu.memory_space<vmem>>, %arg5: memref<1x128xf32, #tpu.memory_space<vmem>>, %arg6: memref<128x128xbf16, #tpu.memory_space<vmem>>, %arg7: memref<1x128xf32, #tpu.memory_space<vmem>>, %arg8: memref<8x4xf32, #tpu.memory_space<vmem>>) attributes {dimension_semantics = [#tpu.dimension_semantics<parallel>], iteration_bounds = array<i64: 1>, scalar_prefetch = 0 : i64, scratch_operands = 0 : i64, tpu.core_type = #tpu.core_type<tc>, window_params = [{transform_indices = @transform_0, window_bounds = array<i64: 8, 8>}, {pipeline_mode = #tpu.pipeline_mode<synchronous>, transform_indices = @transform_1, window_bounds = array<i64: 8, 128>}, {pipeline_mode = #tpu.pipeline_mode<synchronous>, transform_indices = @transform_2, window_bounds = array<i64: 1, 128>}, {pipeline_mode = #tpu.pipeline_mode<synchronous>, transform_indices = @transform_3, window_bounds = array<i64: 128, 128>}, {pipeline_mode = #tpu.pipeline_mode<synchronous>, transform_indices = @transform_4, window_bounds = array<i64: 1, 128>}, {pipeline_mode = #tpu.pipeline_mode<synchronous>, transform_indices = @transform_5, window_bounds = array<i64: 128, 128>}, {pipeline_mode = #tpu.pipeline_mode<synchronous>, transform_indices = @transform_6, window_bounds = array<i64: 1, 128>}, {transform_indices = @transform_7, window_bounds = array<i64: 8, 4>}]} {
    %c0 = arith.constant 0 : index
    %c0_0 = arith.constant 0 : index
    %0 = vector.load %arg1[%c0, %c0_0] : memref<8x8xf32, #tpu.memory_space<vmem>>, vector<8x8xf32>
    %1 = arith.truncf %0 : vector<8x8xf32> to vector<8x8xbf16>
    %c0_1 = arith.constant 0 : index
    %c0_2 = arith.constant 0 : index
    %2 = vector.load %arg2[%c0_1, %c0_2] : memref<8x128xbf16, #tpu.memory_space<vmem>>, vector<8x128xbf16>
    %cst = arith.constant dense<0.000000e+00> : vector<8x128xf32>
    %3 = tpu.matmul %1, %2, %cst {dimension_numbers = #tpu.dot_dimension_numbers<[1], [0], [0], [1], [0, 0, 1, 1], [], []>} : vector<8x8xbf16>, vector<8x128xbf16>, vector<8x128xf32> -> vector<8x128xf32>
    %c0_3 = arith.constant 0 : index
    %c0_4 = arith.constant 0 : index
    %4 = vector.load %arg3[%c0_3, %c0_4] : memref<1x128xf32, #tpu.memory_space<vmem>>, vector<1x128xf32>
    %5 = vector.broadcast %4 : vector<1x128xf32> to vector<8x128xf32>
    %6 = arith.addf %3, %5 : vector<8x128xf32>
    %cst_5 = arith.constant 0.000000e+00 : f32
    %7 = vector.broadcast %cst_5 : f32 to vector<8x128xf32>
    %8 = arith.maximumf %6, %7 : vector<8x128xf32>
    %9 = arith.truncf %8 : vector<8x128xf32> to vector<8x128xbf16>
    %c0_6 = arith.constant 0 : index
    %c0_7 = arith.constant 0 : index
    %10 = vector.load %arg4[%c0_6, %c0_7] : memref<128x128xbf16, #tpu.memory_space<vmem>>, vector<128x128xbf16>
    %cst_8 = arith.constant dense<0.000000e+00> : vector<8x128xf32>
    %11 = tpu.matmul %9, %10, %cst_8 {dimension_numbers = #tpu.dot_dimension_numbers<[1], [0], [0], [1], [0, 0, 1, 1], [], []>} : vector<8x128xbf16>, vector<128x128xbf16>, vector<8x128xf32> -> vector<8x128xf32>
    %c0_9 = arith.constant 0 : index
    %c0_10 = arith.constant 0 : index
    %12 = vector.load %arg5[%c0_9, %c0_10] : memref<1x128xf32, #tpu.memory_space<vmem>>, vector<1x128xf32>
    %13 = vector.broadcast %12 : vector<1x128xf32> to vector<8x128xf32>
    %14 = arith.addf %11, %13 : vector<8x128xf32>
    %cst_11 = arith.constant -1.000000e+00 : f32
    %cst_12 = arith.constant 1.000000e+00 : f32
    %15 = vector.broadcast %cst_11 : f32 to vector<8x128xf32>
    %16 = arith.maximumf %15, %14 : vector<8x128xf32>
    %17 = vector.broadcast %cst_12 : f32 to vector<8x128xf32>
    %18 = arith.minimumf %17, %16 : vector<8x128xf32>
    %19 = arith.truncf %18 : vector<8x128xf32> to vector<8x128xbf16>
    %c0_13 = arith.constant 0 : index
    %c0_14 = arith.constant 0 : index
    %20 = vector.load %arg6[%c0_13, %c0_14] : memref<128x128xbf16, #tpu.memory_space<vmem>>, vector<128x128xbf16>
    %cst_15 = arith.constant dense<0.000000e+00> : vector<8x128xf32>
    %21 = tpu.matmul %19, %20, %cst_15 {dimension_numbers = #tpu.dot_dimension_numbers<[1], [0], [0], [1], [0, 0, 1, 1], [], []>} : vector<8x128xbf16>, vector<128x128xbf16>, vector<8x128xf32> -> vector<8x128xf32>
    %c0_16 = arith.constant 0 : index
    %c0_17 = arith.constant 0 : index
    %22 = vector.load %arg7[%c0_16, %c0_17] : memref<1x128xf32, #tpu.memory_space<vmem>>, vector<1x128xf32>
    %23 = vector.broadcast %22 : vector<1x128xf32> to vector<8x128xf32>
    %24 = arith.addf %21, %23 : vector<8x128xf32>
    %cst_18 = arith.constant dense<0xFF800000> : vector<8xf32>
    %25 = vector.multi_reduction <maximumf>, %24, %cst_18 [1] : vector<8x128xf32> to vector<8xf32>
    %26 = vector.shape_cast %25 : vector<8xf32> to vector<8x1xf32>
    %27 = vector.broadcast %26 : vector<8x1xf32> to vector<8x128xf32>
    %28 = arith.subf %24, %27 : vector<8x128xf32>
    %29 = math.exp %28 : vector<8x128xf32>
    %cst_19 = arith.constant dense<0.000000e+00> : vector<8xf32>
    %30 = vector.multi_reduction <add>, %29, %cst_19 [1] : vector<8x128xf32> to vector<8xf32>
    %31 = vector.shape_cast %30 : vector<8xf32> to vector<8x1xf32>
    %32 = vector.broadcast %31 : vector<8x1xf32> to vector<8x128xf32>
    %33 = arith.divf %29, %32 : vector<8x128xf32>
    %34 = vector.extract_strided_slice %33 {offsets = [0, 0], sizes = [8, 4], strides = [1, 1]} : vector<8x128xf32> to vector<8x4xf32>
    %c0_20 = arith.constant 0 : index
    %c0_21 = arith.constant 0 : index
    %35 = vector.load %arg8[%c0_20, %c0_21] : memref<8x4xf32, #tpu.memory_space<vmem>>, vector<8x4xf32>
    tpu.vector_store %arg8[%c0_20, %c0_21], %34 {strides = array<i32>} : memref<8x4xf32, #tpu.memory_space<vmem>>, vector<8x4xf32>,
    return
  }
  func.func @transform_0(%arg0: i32) -> (i32, i32) {
    %c0_i32 = arith.constant 0 : i32
    %c0_i32_0 = arith.constant 0 : i32
    return %arg0, %c0_i32 : i32, i32
  }
  func.func @transform_1(%arg0: i32) -> (i32, i32) {
    %c0_i32 = arith.constant 0 : i32
    %c0_i32_0 = arith.constant 0 : i32
    %c0_i32_1 = arith.constant 0 : i32
    return %c0_i32, %c0_i32_0 : i32, i32
  }
  func.func @transform_2(%arg0: i32) -> (i32, i32) {
    %c0_i32 = arith.constant 0 : i32
    %c0_i32_0 = arith.constant 0 : i32
    %c0_i32_1 = arith.constant 0 : i32
    return %c0_i32, %c0_i32_0 : i32, i32
  }
  func.func @transform_3(%arg0: i32) -> (i32, i32) {
    %c0_i32 = arith.constant 0 : i32
    %c0_i32_0 = arith.constant 0 : i32
    %c0_i32_1 = arith.constant 0 : i32
    return %c0_i32, %c0_i32_0 : i32, i32
  }
  func.func @transform_4(%arg0: i32) -> (i32, i32) {
    %c0_i32 = arith.constant 0 : i32
    %c0_i32_0 = arith.constant 0 : i32
    %c0_i32_1 = arith.constant 0 : i32
    return %c0_i32, %c0_i32_0 : i32, i32
  }
  func.func @transform_5(%arg0: i32) -> (i32, i32) {
    %c0_i32 = arith.constant 0 : i32
    %c0_i32_0 = arith.constant 0 : i32
    %c0_i32_1 = arith.constant 0 : i32
    return %c0_i32, %c0_i32_0 : i32, i32
  }
  func.func @transform_6(%arg0: i32) -> (i32, i32) {
    %c0_i32 = arith.constant 0 : i32
    %c0_i32_0 = arith.constant 0 : i32
    %c0_i32_1 = arith.constant 0 : i32
    return %c0_i32, %c0_i32_0 : i32, i32
  }
  func.func @transform_7(%arg0: i32) -> (i32, i32) {
    %c0_i32 = arith.constant 0 : i32
    %c0_i32_0 = arith.constant 0 : i32
    return %arg0, %c0_i32 : i32, i32
  }
}

</mosaic_0001>

<llo_original>
// kernel: predictor_forward.1
$region0: #{predictor_forward.1}
  #allocation0 [shape = 'u32[]', space=smem, size = 0x4, offset = 0x4, fixed_abs, tag = 'smem constant byte address 0x4 - core index']
  #allocation1 [shape = 'u32[144,128]{1,0:T(1,128)}', space=vmem, size = 0x12000, scoped, tag = 'internal scratch']
  %s0 = inlined_call_operand.vmem [shape: f32[8,8], index: 0, kind: input, shape index: {}]
  %s1 = inlined_call_operand.vmem [shape: bf16[8,128], index: 1, kind: input, shape index: {}]
  %s2 = inlined_call_operand.vmem [shape: f32[1,128], index: 2, kind: input, shape index: {}]
  %s3 = inlined_call_operand.vmem [shape: bf16[128,128], index: 3, kind: input, shape index: {}]
  %s4 = inlined_call_operand.vmem [shape: f32[1,128], index: 4, kind: input, shape index: {}]
  %s5 = inlined_call_operand.vmem [shape: bf16[128,128], index: 5, kind: input, shape index: {}]
  %s6 = inlined_call_operand.vmem [shape: f32[1,128], index: 6, kind: input, shape index: {}]
  %s7 = inlined_call_operand.vmem [shape: f32[8,4], index: 7, kind: output, shape index: {}]
  %s8 = sld [smem:[#allocation0]]
  $region38: #{predictor_forward.1} parent=0
    _
  %s10 = ssub.s32 1, %s8
  %s11 = scalar_select 0, %s10, %s8
  // Predicated region
  $region2: #{predictor_forward.1} parent=0 // pred_check
    _
  $region3: #{predictor_forward.1} parent=0 // pred_check_branch
    %13 = sbr.rel (0) target = $region5
  $region4: #{predictor_forward.1} parent=0 // pred_region
    _
  $region5: #{predictor_forward.1} parent=0 // pred_fallthru
    _
  // Predicated region
  $region6: #{predictor_forward.1} parent=0 // pred_check
    _
  $region7: #{predictor_forward.1} parent=0 // pred_check_branch
    %15 = sbr.rel (0) target = $region9
  $region8: #{predictor_forward.1} parent=0 // pred_region
    _
  $region9: #{predictor_forward.1} parent=0 // pred_fallthru
    _
  // Predicated region
  $region10: #{predictor_forward.1} parent=0 // pred_check
    _
  $region11: #{predictor_forward.1} parent=0 // pred_check_branch
    %17 = sbr.rel (0) target = $region13
  $region12: #{predictor_forward.1} parent=0 // pred_region
    _
  $region13: #{predictor_forward.1} parent=0 // pred_fallthru
    _
  // Predicated region
  $region14: #{predictor_forward.1} parent=0 // pred_check
    _
  $region15: #{predictor_forward.1} parent=0 // pred_check_branch
    %19 = sbr.rel (0) target = $region17
  $region16: #{predictor_forward.1} parent=0 // pred_region
    _
  $region17: #{predictor_forward.1} parent=0 // pred_fallthru
    _
  // Predicated region
  $region18: #{predictor_forward.1} parent=0 // pred_check
    _
  $region19: #{predictor_forward.1} parent=0 // pred_check_branch
    %21 = sbr.rel (0) target = $region21
  $region20: #{predictor_forward.1} parent=0 // pred_region
    _
  $region21: #{predictor_forward.1} parent=0 // pred_fallthru
    _
  // Predicated region
  $region22: #{predictor_forward.1} parent=0 // pred_check
    _
  $region23: #{predictor_forward.1} parent=0 // pred_check_branch
    %23 = sbr.rel (0) target = $region25
  $region24: #{predictor_forward.1} parent=0 // pred_region
    _
  $region25: #{predictor_forward.1} parent=0 // pred_fallthru
    _
  // Predicated region
  $region26: #{predictor_forward.1} parent=0 // pred_check
    _
  $region27: #{predictor_forward.1} parent=0 // pred_check_branch
    %25 = sbr.rel (0) target = $region29
  $region28: #{predictor_forward.1} parent=0 // pred_region
    _
  $region29: #{predictor_forward.1} parent=0 // pred_fallthru
    _
  %v27 = vld [vmem:[%s0] sm:$0xff]
  %v28 = vpack.c.bf16 %v27, %v27
  %v29 = vld [vmem:[%s1] sm:$0xf]
  %v30 = vld [vmem:[%s2] sm:$0x1]
  %v32 = vlaneseq
  %v33 = vshrl.u32 %v32, 7
  %v34 = vsub.s32 0, %v33
  %v35 = vrot.slane %v30, %v34
  %vm37 = vcmask 64512
  %v39 = vsel %vm37, %v28, 0
  %vm41 = vcmask 1043456
  %v43 = vsel %vm41, %v29, 0
  %45 = vmatprep.subr.bf16.mxu0 0
  %46 = vmatpush1.bf16.msra.mxu0 %v43
  %47 = vmatprep.subr.bf16.mxu0 0
  %48 = vmatpush1.bf16.msra.mxu0 0
  %49 = vmatprep.subr.bf16.mxu0 0
  %50 = vmatpush1.bf16.msra.mxu0 0
  %51 = vmatprep.subr.bf16.mxu0 0
  %52 = vmatpush1.bf16.msra.mxu0 0
  %53 = vmatprep.subr.bf16.mxu0 0
  %54 = vmatpush1.bf16.msra.mxu0 0
  %55 = vmatprep.subr.bf16.mxu0 0
  %56 = vmatpush1.bf16.msra.mxu0 0
  %57 = vmatprep.subr.bf16.mxu0 0
  %58 = vmatpush1.bf16.msra.mxu0 0
  %59 = vmatprep.subr.bf16.mxu0 0
  %60 = vmatpush1.bf16.msra.mxu0 0
  %61 = vmatprep.subr.bf16.mxu0 0
  %62 = vmatpush1.bf16.msra.mxu0 0
  %63 = vmatprep.subr.bf16.mxu0 0
  %64 = vmatpush1.bf16.msra.mxu0 0
  %65 = vmatprep.subr.bf16.mxu0 0
  %66 = vmatpush1.bf16.msra.mxu0 0
  %67 = vmatprep.subr.bf16.mxu0 0
  %68 = vmatpush1.bf16.msra.mxu0 0
  %69 = vmatprep.subr.bf16.mxu0 0
  %70 = vmatpush1.bf16.msra.mxu0 0
  %71 = vmatprep.subr.bf16.mxu0 0
  %72 = vmatpush1.bf16.msra.mxu0 0
  %73 = vmatprep.subr.bf16.mxu0 0
  %74 = vmatpush1.bf16.msra.mxu0 0
  %75 = vmatprep.subr.bf16.mxu0 0
  %76 = vmatpush1.bf16.msra.mxu0 0
  %77 = vmatprep.mubr.bf16.mxu0 0
  %78 = vmatmul.mubr.bf16.gmra.mrb[0].mxu0 %v39
  %v79 = vpop.f32.mrb[0].mxu0
  %v80 = vadd.f32 %v35, %v79
  %v81 = vpop.f32.mrb[0].mxu0
  %v82 = vpop.f32.mrb[0].mxu0
  %v83 = vpop.f32.mrb[0].mxu0
  %84 = vdwg.mxu0
  %v85 = vmax.f32 %v80, 0.0
  %v86 = vpack.c.bf16 %v85, %v85
  %v87 = vld [vmem:[%s3] sm:$0xf]
  %v88 = vld [vmem:[%s3 + $0x4] sm:$0xf]
  %v89 = vld [vmem:[%s3 + $0x8] sm:$0xf]
  %v90 = vld [vmem:[%s3 + $0xc] sm:$0xf]
  %v91 = vld [vmem:[%s3 + $0x10] sm:$0xf]
  %v92 = vld [vmem:[%s3 + $0x14] sm:$0xf]
  %v93 = vld [vmem:[%s3 + $0x18] sm:$0xf]
  %v94 = vld [vmem:[%s3 + $0x1c] sm:$0xf]
  %v95 = vld [vmem:[%s3 + $0x20] sm:$0xf]
  %v96 = vld [vmem:[%s3 + $0x24] sm:$0xf]
  %v97 = vld [vmem:[%s3 + $0x28] sm:$0xf]
  %v98 = vld [vmem:[%s3 + $0x2c] sm:$0xf]
  %v99 = vld [vmem:[%s3 + $0x30] sm:$0xf]
  %v100 = vld [vmem:[%s3 + $0x34] sm:$0xf]
  %v101 = vld [vmem:[%s3 + $0x38] sm:$0xf]
  %v102 = vld [vmem:[%s3 + $0x3c] sm:$0xf]
  %v103 = vld [vmem:[%s4] sm:$0x1]
  %v105 = vlaneseq
  %v106 = vshrl.u32 %v105, 7
  %v107 = vsub.s32 0, %v106
  %v108 = vrot.slane %v103, %v107
  %v126 = vunpack.c.l.b16 %v87
  %v127 = vunpack.c.l.b16 %v88
  %v128 = vunpack.c.l.b16 %v89
  %v129 = vunpack.c.l.b16 %v90
  %v130 = vunpack.c.l.b16 %v91
  %v131 = vunpack.c.l.b16 %v92
  %v132 = vunpack.c.l.b16 %v93
  %v133 = vunpack.c.l.b16 %v94
  %v134 = vunpack.c.l.b16 %v95
  %v135 = vunpack.c.l.b16 %v96
  %v136 = vunpack.c.l.b16 %v97
  %v137 = vunpack.c.l.b16 %v98
  %v138 = vunpack.c.l.b16 %v99
  %v139 = vunpack.c.l.b16 %v100
  %v140 = vunpack.c.l.b16 %v101
  %v141 = vunpack.c.l.b16 %v102
  %v142 = vpack.c.b16 %v127, %v126
  %v143 = vpack.c.b16 %v129, %v128
  %v144 = vpack.c.b16 %v131, %v130
  %v145 = vpack.c.b16 %v133, %v132
  %v146 = vpack.c.b16 %v135, %v134
  %v147 = vpack.c.b16 %v137, %v136
  %v148 = vpack.c.b16 %v139, %v138
  %v149 = vpack.c.b16 %v141, %v140
  %158 = vmatprep.subr.bf16.mxu0 0
  %159 = vmatpush1.bf16.msra.mxu0 %v142
  %160 = vmatprep.subr.bf16.mxu0 0
  %161 = vmatpush1.bf16.msra.mxu0 %v143
  %162 = vmatprep.subr.bf16.mxu0 0
  %163 = vmatpush1.bf16.msra.mxu0 %v144
  %164 = vmatprep.subr.bf16.mxu0 0
  %165 = vmatpush1.bf16.msra.mxu0 %v145
  %166 = vmatprep.subr.bf16.mxu0 0
  %167 = vmatpush1.bf16.msra.mxu0 %v146
  %168 = vmatprep.subr.bf16.mxu0 0
  %169 = vmatpush1.bf16.msra.mxu0 %v147
  %170 = vmatprep.subr.bf16.mxu0 0
  %171 = vmatpush1.bf16.msra.mxu0 %v148
  %172 = vmatprep.subr.bf16.mxu0 0
  %173 = vmatpush1.bf16.msra.mxu0 %v149
  %174 = vmatprep.subr.bf16.mxu0 0
  %175 = vmatpush1.bf16.msra.mxu0 0
  %176 = vmatprep.subr.bf16.mxu0 0
  %177 = vmatpush1.bf16.msra.mxu0 0
  %178 = vmatprep.subr.bf16.mxu0 0
  %179 = vmatpush1.bf16.msra.mxu0 0
  %180 = vmatprep.subr.bf16.mxu0 0
  %181 = vmatpush1.bf16.msra.mxu0 0
  %182 = vmatprep.subr.bf16.mxu0 0
  %183 = vmatpush1.bf16.msra.mxu0 0
  %184 = vmatprep.subr.bf16.mxu0 0
  %185 = vmatpush1.bf16.msra.mxu0 0
  %186 = vmatprep.subr.bf16.mxu0 0
  %187 = vmatpush1.bf16.msra.mxu0 0
  %188 = vmatprep.subr.bf16.mxu0 0
  %189 = vmatpush1.bf16.msra.mxu0 0
  %190 = vmatprep.mubr.bf16.mxu0 0
  %191 = vmatmul.mubr.bf16.gmra.mrb[0].mxu0 %v86
  %v192 = vpop.f32.mrb[0].mxu0
  %v193 = vadd.f32 %v108, %v192
  %v194 = vpop.f32.mrb[0].mxu0
  %v195 = vpop.f32.mrb[0].mxu0
  %v196 = vpop.f32.mrb[0].mxu0
  %197 = vdwg.mxu0
  %v198 = vmax.f32 %v193, -1.0
  %v199 = vmin.f32 %v198, 1.0
  %v200 = vpack.c.bf16 %v199, %v199
  %v201 = vld [vmem:[%s5] sm:$0xf]
  %v202 = vld [vmem:[%s5 + $0x4] sm:$0xf]
  %v203 = vld [vmem:[%s5 + $0x8] sm:$0xf]
  %v204 = vld [vmem:[%s5 + $0xc] sm:$0xf]
  %v205 = vld [vmem:[%s5 + $0x10] sm:$0xf]
  %v206 = vld [vmem:[%s5 + $0x14] sm:$0xf]
  %v207 = vld [vmem:[%s5 + $0x18] sm:$0xf]
  %v208 = vld [vmem:[%s5 + $0x1c] sm:$0xf]
  %v209 = vld [vmem:[%s5 + $0x20] sm:$0xf]
  %v210 = vld [vmem:[%s5 + $0x24] sm:$0xf]
  %v211 = vld [vmem:[%s5 + $0x28] sm:$0xf]
  %v212 = vld [vmem:[%s5 + $0x2c] sm:$0xf]
  %v213 = vld [vmem:[%s5 + $0x30] sm:$0xf]
  %v214 = vld [vmem:[%s5 + $0x34] sm:$0xf]
  %v215 = vld [vmem:[%s5 + $0x38] sm:$0xf]
  %v216 = vld [vmem:[%s5 + $0x3c] sm:$0xf]
  %v217 = vld [vmem:[%s6] sm:$0x1]
  %v219 = vlaneseq
  %v220 = vshrl.u32 %v219, 7
  %v221 = vsub.s32 0, %v220
  %v222 = vrot.slane %v217, %v221
  %v240 = vunpack.c.l.b16 %v201
  %v241 = vunpack.c.l.b16 %v202
  %v242 = vunpack.c.l.b16 %v203
  %v243 = vunpack.c.l.b16 %v204
  %v244 = vunpack.c.l.b16 %v205
  %v245 = vunpack.c.l.b16 %v206
  %v246 = vunpack.c.l.b16 %v207
  %v247 = vunpack.c.l.b16 %v208
  %v248 = vunpack.c.l.b16 %v209
  %v249 = vunpack.c.l.b16 %v210
  %v250 = vunpack.c.l.b16 %v211
  %v251 = vunpack.c.l.b16 %v212
  %v252 = vunpack.c.l.b16 %v213
  %v253 = vunpack.c.l.b16 %v214
  %v254 = vunpack.c.l.b16 %v215
  %v255 = vunpack.c.l.b16 %v216
  %v256 = vpack.c.b16 %v241, %v240
  %v257 = vpack.c.b16 %v243, %v242
  %v258 = vpack.c.b16 %v245, %v244
  %v259 = vpack.c.b16 %v247, %v246
  %v260 = vpack.c.b16 %v249, %v248
  %v261 = vpack.c.b16 %v251, %v250
  %v262 = vpack.c.b16 %v253, %v252
  %v263 = vpack.c.b16 %v255, %v254
  %272 = vmatprep.subr.bf16.mxu0 0
  %273 = vmatpush1.bf16.msra.mxu0 %v256
  %274 = vmatprep.subr.bf16.mxu0 0
  %275 = vmatpush1.bf16.msra.mxu0 %v257
  %276 = vmatprep.subr.bf16.mxu0 0
  %277 = vmatpush1.bf16.msra.mxu0 %v258
  %278 = vmatprep.subr.bf16.mxu0 0
  %279 = vmatpush1.bf16.msra.mxu0 %v259
  %280 = vmatprep.subr.bf16.mxu0 0
  %281 = vmatpush1.bf16.msra.mxu0 %v260
  %282 = vmatprep.subr.bf16.mxu0 0
  %283 = vmatpush1.bf16.msra.mxu0 %v261
  %284 = vmatprep.subr.bf16.mxu0 0
  %285 = vmatpush1.bf16.msra.mxu0 %v262
  %286 = vmatprep.subr.bf16.mxu0 0
  %287 = vmatpush1.bf16.msra.mxu0 %v263
  %288 = vmatprep.subr.bf16.mxu0 0
  %289 = vmatpush1.bf16.msra.mxu0 0
  %290 = vmatprep.subr.bf16.mxu0 0
  %291 = vmatpush1.bf16.msra.mxu0 0
  %292 = vmatprep.subr.bf16.mxu0 0
  %293 = vmatpush1.bf16.msra.mxu0 0
  %294 = vmatprep.subr.bf16.mxu0 0
  %295 = vmatpush1.bf16.msra.mxu0 0
  %296 = vmatprep.subr.bf16.mxu0 0
  %297 = vmatpush1.bf16.msra.mxu0 0
  %298 = vmatprep.subr.bf16.mxu0 0
  %299 = vmatpush1.bf16.msra.mxu0 0
  %300 = vmatprep.subr.bf16.mxu0 0
  %301 = vmatpush1.bf16.msra.mxu0 0
  %302 = vmatprep.subr.bf16.mxu0 0
  %303 = vmatpush1.bf16.msra.mxu0 0
  %304 = vmatprep.mubr.bf16.mxu0 0
  %305 = vmatmul.mubr.bf16.gmra.mrb[0].mxu0 %v200
  %v306 = vpop.f32.mrb[0].mxu0
  %v307 = vadd.f32 %v222, %v306
  %v308 = vpop.f32.mrb[0].mxu0
  %v309 = vpop.f32.mrb[0].mxu0
  %v310 = vpop.f32.mrb[0].mxu0
  %311 = vdwg.mxu0
  %312 = vmax.xlane.f32.xlu0 %v307
  %v313 = vpop.xlane.xlu0 %312
  %v314 = vsub.f32 %v307, %v313
  %v315 = vmul.f32 %v314, 1.442695
  %v316 = vpow.pop %v315
  %317 = vadd.xlane.f32.xlu0 %v316
  %v318 = vpop.xlane.xlu0 %317
  %v319 = vrcp.pop %v318
  %v320 = vmul.f32 %v316, %v319
  %vm321 = vcmask 31744
  %322 = vst.msk [vmem:[%s7] sm:$0xff] %vm321, %v320
  // Predicated region
  $region30: #{predictor_forward.1} parent=0 // pred_check
    _
  $region31: #{predictor_forward.1} parent=0 // pred_check_branch
    %324 = sbr.rel (0) target = $region33
  $region32: #{predictor_forward.1} parent=0 // pred_region
    _
  $region33: #{predictor_forward.1} parent=0 // pred_fallthru
    _
  // Predicated region
  $region34: #{predictor_forward.1} parent=0 // pred_check
    _
  $region35: #{predictor_forward.1} parent=0 // pred_check_branch
    %326 = sbr.rel (0) target = $region37
  $region36: #{predictor_forward.1} parent=0 // pred_region
    _
  $region37: #{predictor_forward.1} parent=0 // pred_fallthru
    _

</llo_original>
